<compile_context>
chip_gen: v7x
topology: tpu7x:2x2x1
jax: 0.10.0
libtpu: 0.0.40
codegen_flags: <defaults>
</compile_context>

<pallas_src>
import jax
import jax.numpy as jnp
from jax.experimental import pallas as pl
from jax.experimental.pallas import tpu as pltpu

SUBLANES = 8
LANES = 128
BLOCK_ROWS = 2048        # (2048, 128) f32 tile = 1 MiB per input per buffer
NUM_ROW_SHARDS = 2       # leading parallel axis (uses both TCs on v7x)


def _dice_kernel(meta_ref, x_ref, t_ref, out_ref):
    """Partial Dice sums for one row-shard.

    meta_ref : SMEM (2,) int32  -> [total_valid_rows, last_in_bounds_tile]
    x_ref    : (block_rows, 128) input tile (native dtype)
    t_ref    : (block_rows, 128) target tile (native dtype)
    out_ref  : (2, 8, 128) f32   -> [sum(x*t) partial, sum(x+t) partial]
               (same output block revisited across the reduction axis)
    """
    p = pl.program_id(0)              # row shard (parallel)
    j = pl.program_id(1)              # tile within shard (reduction)
    tiles_per_shard = pl.num_programs(1)
    block_rows = x_ref.shape[0]

    @pl.when(j == 0)
    def _():
        out_ref[...] = jnp.zeros_like(out_ref)

    tile_id = p * tiles_per_shard + j
    valid_rows = meta_ref[0] - tile_id * block_rows

    x = x_ref[...].astype(jnp.float32)
    t = t_ref[...].astype(jnp.float32)

    def accumulate(xv, tv):
        groups = block_rows // SUBLANES
        # (block_rows,128) -> (groups,8,128) is a pure vreg regrouping; the
        # axis-0 sum is elementwise VPU adds, keeping the (8,128) lane layout.
        inter = (xv * tv).reshape(groups, SUBLANES, LANES).sum(axis=0)
        both = (xv + tv).reshape(groups, SUBLANES, LANES).sum(axis=0)
        out_ref[0] += inter
        out_ref[1] += both

    # Full tiles (common case): no masking work in the hot loop.
    @pl.when(valid_rows >= block_rows)
    def _():
        accumulate(x, t)

    # Ragged / overhanging tiles: mask rows past the end of the valid data.
    @pl.when(valid_rows < block_rows)
    def _():
        row_idx = jax.lax.broadcasted_iota(jnp.int32, (block_rows, LANES), 0)
        keep = row_idx < valid_rows
        accumulate(jnp.where(keep, x, 0.0), jnp.where(keep, t, 0.0))


def dice_loss(inputs, targets, smooth=1.0):
    """Pallas implementation of DiceLoss.forward."""
    assert inputs.shape == targets.shape
    x = jnp.ravel(inputs)
    t = jnp.ravel(targets)
    n = x.shape[0]

    # View the flat data as (rows, 128) with rows % 8 == 0.  Only materialize
    # zero padding when the size requires it (zeros don't change any sum).
    chunk = SUBLANES * LANES
    padded = ((n + chunk - 1) // chunk) * chunk
    if padded != n:
        x = jnp.pad(x, (0, padded - n))
        t = jnp.pad(t, (0, padded - n))
    rows = padded // LANES
    x2 = x.reshape(rows, LANES)
    t2 = t.reshape(rows, LANES)

    block_rows = min(BLOCK_ROWS, rows)          # multiple of 8 by construction
    n_tiles = -(-rows // block_rows)
    shards = NUM_ROW_SHARDS if n_tiles >= NUM_ROW_SHARDS else 1
    tiles_per_shard = -(-n_tiles // shards)

    # Scalar prefetch: [number of valid rows, last in-bounds tile index].
    meta = jnp.array([rows, n_tiles - 1], dtype=jnp.int32)

    def in_index_map(p, j, meta_ref):
        # Clamp so the DMA block index never leaves the array; overhanging
        # tiles are fully masked out inside the kernel.
        return (jnp.minimum(p * tiles_per_shard + j, meta_ref[1]), 0)

    out = pl.pallas_call(
        _dice_kernel,
        out_shape=jax.ShapeDtypeStruct((2 * shards, SUBLANES, LANES), jnp.float32),
        grid_spec=pltpu.PrefetchScalarGridSpec(
            num_scalar_prefetch=1,
            grid=(shards, tiles_per_shard),
            in_specs=[
                pl.BlockSpec((block_rows, LANES), in_index_map),
                pl.BlockSpec((block_rows, LANES), in_index_map),
            ],
            out_specs=pl.BlockSpec(
                (2, SUBLANES, LANES), lambda p, j, meta_ref: (p, 0, 0)
            ),
        ),
        compiler_params=pltpu.CompilerParams(
            dimension_semantics=("parallel", "arbitrary"),
        ),
    )(meta, x2, t2)

    # Tiny final cross-lane reduce + dice formula (smooth applied here).
    partial = out.reshape(shards, 2, SUBLANES, LANES).sum(axis=(0, 2, 3))
    intersection = partial[0]
    denom = partial[1]                      # inputs.sum() + targets.sum()
    smooth = jnp.float32(smooth)
    dice = (2.0 * intersection + smooth) / (denom + smooth)
    return 1.0 - dice


def dice_loss_ref(inputs, targets, smooth=1.0):
    x = jnp.ravel(inputs).astype(jnp.float32)
    t = jnp.ravel(targets).astype(jnp.float32)
    inter = jnp.sum(x * t)
    dice = (2.0 * inter + smooth) / (jnp.sum(x) + jnp.sum(t) + smooth)
    return 1.0 - dice


if __name__ == "__main__":
    key = jax.random.PRNGKey(0)
    k1, k2, k3, k4 = jax.random.split(key, 4)

    # Small NCHW case (matches the module's typical use: probs vs binary mask).
    shape = (2, 4, 16, 16)
    inputs = jax.nn.sigmoid(jax.random.normal(k1, shape, dtype=jnp.float32))
    targets = (jax.random.uniform(k2, shape) > 0.5).astype(jnp.float32)
    loss = jax.block_until_ready(dice_loss(inputs, targets))
    ref = jax.block_until_ready(dice_loss_ref(inputs, targets))
    assert jnp.allclose(loss, ref, rtol=1e-5, atol=1e-6), (loss, ref)

    # Larger case exercising the multi-tile, two-shard, and ragged-tail paths.
    shape2 = (8, 8, 96, 96)
    inputs2 = jax.nn.sigmoid(jax.random.normal(k3, shape2, dtype=jnp.float32))
    targets2 = (jax.random.uniform(k4, shape2) > 0.5).astype(jnp.float32)
    loss2 = jax.block_until_ready(dice_loss(inputs2, targets2, smooth=1.0))
    ref2 = jax.block_until_ready(dice_loss_ref(inputs2, targets2, smooth=1.0))
    assert jnp.allclose(loss2, ref2, rtol=1e-4, atol=1e-6), (loss2, ref2)

    print("KERNEL_OK")
</pallas_src>

<mosaic_0001>
module attributes {stable_mosaic.version = 11 : i64} {
  func.func @_dice_kernel(%arg0: i32, %arg1: i32, %arg2: memref<2xi32, #tpu.memory_space<smem>>, %arg3: memref<16x128xf32, #tpu.memory_space<vmem>>, %arg4: memref<16x128xf32, #tpu.memory_space<vmem>>, %arg5: memref<2x8x128xf32, #tpu.memory_space<vmem>>) attributes {dimension_semantics = [#tpu.dimension_semantics<parallel>, #tpu.dimension_semantics<arbitrary>], iteration_bounds = array<i64: 1, 1>, scalar_prefetch = 1 : i64, scratch_operands = 0 : i64, tpu.core_type = #tpu.core_type<tc>, window_params = [{transform_indices = @transform_0, window_bounds = array<i64: 16, 128>}, {transform_indices = @transform_1, window_bounds = array<i64: 16, 128>}, {transform_indices = @transform_2, window_bounds = array<i64: 2, 8, 128>}]} {
    %c0_i32 = arith.constant 0 : i32
    %0 = arith.cmpi eq, %arg1, %c0_i32 : i32
    %1 = arith.extui %0 : i1 to i32
    %c0_i32_0 = arith.constant 0 : i32
    %2 = arith.cmpi ne, %1, %c0_i32_0 : i32
    scf.if %2 {
      %cst = arith.constant 0.000000e+00 : f32
      %16 = vector.broadcast %cst : f32 to vector<2x8x128xf32>
      %c0_9 = arith.constant 0 : index
      %c0_10 = arith.constant 0 : index
      %c0_11 = arith.constant 0 : index
      %17 = vector.load %arg5[%c0_9, %c0_10, %c0_11] : memref<2x8x128xf32, #tpu.memory_space<vmem>>, vector<2x8x128xf32>
      tpu.vector_store %arg5[%c0_9, %c0_10, %c0_11], %16 {strides = array<i32>} : memref<2x8x128xf32, #tpu.memory_space<vmem>>, vector<2x8x128xf32>,
    } else {
    }
    %c1_i32 = arith.constant 1 : i32
    %3 = arith.muli %arg0, %c1_i32 : i32
    %4 = arith.addi %3, %arg1 : i32
    %c0 = arith.constant 0 : index
    %5 = memref.load %arg2[%c0] : memref<2xi32, #tpu.memory_space<smem>>
    %c16_i32 = arith.constant 16 : i32
    %6 = arith.muli %4, %c16_i32 : i32
    %7 = arith.subi %5, %6 : i32
    %c0_1 = arith.constant 0 : index
    %c0_2 = arith.constant 0 : index
    %8 = vector.load %arg3[%c0_1, %c0_2] : memref<16x128xf32, #tpu.memory_space<vmem>>, vector<16x128xf32>
    %c0_3 = arith.constant 0 : index
    %c0_4 = arith.constant 0 : index
    %9 = vector.load %arg4[%c0_3, %c0_4] : memref<16x128xf32, #tpu.memory_space<vmem>>, vector<16x128xf32>
    %c16_i32_5 = arith.constant 16 : i32
    %10 = arith.cmpi sge, %7, %c16_i32_5 : i32
    %11 = arith.extui %10 : i1 to i32
    %c0_i32_6 = arith.constant 0 : i32
    %12 = arith.cmpi ne, %11, %c0_i32_6 : i32
    scf.if %12 {
      %16 = arith.mulf %8, %9 : vector<16x128xf32>
      %17 = vector.shape_cast %16 : vector<16x128xf32> to vector<2x8x128xf32>
      %cst = arith.constant dense<0.000000e+00> : vector<8x128xf32>
      %18 = vector.multi_reduction <add>, %17, %cst [0] : vector<2x8x128xf32> to vector<8x128xf32>
      %19 = arith.addf %8, %9 : vector<16x128xf32>
      %20 = vector.shape_cast %19 : vector<16x128xf32> to vector<2x8x128xf32>
      %cst_9 = arith.constant dense<0.000000e+00> : vector<8x128xf32>
      %21 = vector.multi_reduction <add>, %20, %cst_9 [0] : vector<2x8x128xf32> to vector<8x128xf32>
      %c0_10 = arith.constant 0 : index
      %c0_11 = arith.constant 0 : index
      %c0_12 = arith.constant 0 : index
      %22 = vector.load %arg5[%c0_10, %c0_11, %c0_12] : memref<2x8x128xf32, #tpu.memory_space<vmem>>, vector<1x8x128xf32>
      %23 = vector.shape_cast %22 : vector<1x8x128xf32> to vector<8x128xf32>
      %24 = arith.addf %23, %18 : vector<8x128xf32>
      %c0_13 = arith.constant 0 : index
      %c0_14 = arith.constant 0 : index
      %c0_15 = arith.constant 0 : index
      %25 = vector.load %arg5[%c0_13, %c0_14, %c0_15] : memref<2x8x128xf32, #tpu.memory_space<vmem>>, vector<1x8x128xf32>
      %26 = vector.shape_cast %25 : vector<1x8x128xf32> to vector<8x128xf32>
      %27 = vector.shape_cast %24 : vector<8x128xf32> to vector<1x8x128xf32>
      tpu.vector_store %arg5[%c0_13, %c0_14, %c0_15], %27 {strides = array<i32>} : memref<2x8x128xf32, #tpu.memory_space<vmem>>, vector<1x8x128xf32>,
      %c1 = arith.constant 1 : index
      %c0_16 = arith.constant 0 : index
      %c0_17 = arith.constant 0 : index
      %28 = vector.load %arg5[%c1, %c0_16, %c0_17] : memref<2x8x128xf32, #tpu.memory_space<vmem>>, vector<1x8x128xf32>
      %29 = vector.shape_cast %28 : vector<1x8x128xf32> to vector<8x128xf32>
      %30 = arith.addf %29, %21 : vector<8x128xf32>
      %c1_18 = arith.constant 1 : index
      %c0_19 = arith.constant 0 : index
      %c0_20 = arith.constant 0 : index
      %31 = vector.load %arg5[%c1_18, %c0_19, %c0_20] : memref<2x8x128xf32, #tpu.memory_space<vmem>>, vector<1x8x128xf32>
      %32 = vector.shape_cast %31 : vector<1x8x128xf32> to vector<8x128xf32>
      %33 = vector.shape_cast %30 : vector<8x128xf32> to vector<1x8x128xf32>
      tpu.vector_store %arg5[%c1_18, %c0_19, %c0_20], %33 {strides = array<i32>} : memref<2x8x128xf32, #tpu.memory_space<vmem>>, vector<1x8x128xf32>,
    } else {
    }
    %c16_i32_7 = arith.constant 16 : i32
    %13 = arith.cmpi slt, %7, %c16_i32_7 : i32
    %14 = arith.extui %13 : i1 to i32
    %c0_i32_8 = arith.constant 0 : i32
    %15 = arith.cmpi ne, %14, %c0_i32_8 : i32
    scf.if %15 {
      %16 = tpu.iota {dimensions = array<i32: 0>} : vector<16x128xi32>
      %17 = vector.broadcast %7 : i32 to vector<16x128xi32>
      %18 = arith.cmpi slt, %16, %17 : vector<16x128xi32>
      %cst = arith.constant 0.000000e+00 : f32
      %19 = vector.broadcast %cst : f32 to vector<16x128xf32>
      %20 = arith.select %18, %8, %19 : vector<16x128xi1>, vector<16x128xf32>
      %cst_9 = arith.constant 0.000000e+00 : f32
      %21 = vector.broadcast %cst_9 : f32 to vector<16x128xf32>
      %22 = arith.select %18, %9, %21 : vector<16x128xi1>, vector<16x128xf32>
      %23 = arith.mulf %20, %22 : vector<16x128xf32>
      %24 = vector.shape_cast %23 : vector<16x128xf32> to vector<2x8x128xf32>
      %cst_10 = arith.constant dense<0.000000e+00> : vector<8x128xf32>
      %25 = vector.multi_reduction <add>, %24, %cst_10 [0] : vector<2x8x128xf32> to vector<8x128xf32>
      %26 = arith.addf %20, %22 : vector<16x128xf32>
      %27 = vector.shape_cast %26 : vector<16x128xf32> to vector<2x8x128xf32>
      %cst_11 = arith.constant dense<0.000000e+00> : vector<8x128xf32>
      %28 = vector.multi_reduction <add>, %27, %cst_11 [0] : vector<2x8x128xf32> to vector<8x128xf32>
      %c0_12 = arith.constant 0 : index
      %c0_13 = arith.constant 0 : index
      %c0_14 = arith.constant 0 : index
      %29 = vector.load %arg5[%c0_12, %c0_13, %c0_14] : memref<2x8x128xf32, #tpu.memory_space<vmem>>, vector<1x8x128xf32>
      %30 = vector.shape_cast %29 : vector<1x8x128xf32> to vector<8x128xf32>
      %31 = arith.addf %30, %25 : vector<8x128xf32>
      %c0_15 = arith.constant 0 : index
      %c0_16 = arith.constant 0 : index
      %c0_17 = arith.constant 0 : index
      %32 = vector.load %arg5[%c0_15, %c0_16, %c0_17] : memref<2x8x128xf32, #tpu.memory_space<vmem>>, vector<1x8x128xf32>
      %33 = vector.shape_cast %32 : vector<1x8x128xf32> to vector<8x128xf32>
      %34 = vector.shape_cast %31 : vector<8x128xf32> to vector<1x8x128xf32>
      tpu.vector_store %arg5[%c0_15, %c0_16, %c0_17], %34 {strides = array<i32>} : memref<2x8x128xf32, #tpu.memory_space<vmem>>, vector<1x8x128xf32>,
      %c1 = arith.constant 1 : index
      %c0_18 = arith.constant 0 : index
      %c0_19 = arith.constant 0 : index
      %35 = vector.load %arg5[%c1, %c0_18, %c0_19] : memref<2x8x128xf32, #tpu.memory_space<vmem>>, vector<1x8x128xf32>
      %36 = vector.shape_cast %35 : vector<1x8x128xf32> to vector<8x128xf32>
      %37 = arith.addf %36, %28 : vector<8x128xf32>
      %c1_20 = arith.constant 1 : index
      %c0_21 = arith.constant 0 : index
      %c0_22 = arith.constant 0 : index
      %38 = vector.load %arg5[%c1_20, %c0_21, %c0_22] : memref<2x8x128xf32, #tpu.memory_space<vmem>>, vector<1x8x128xf32>
      %39 = vector.shape_cast %38 : vector<1x8x128xf32> to vector<8x128xf32>
      %40 = vector.shape_cast %37 : vector<8x128xf32> to vector<1x8x128xf32>
      tpu.vector_store %arg5[%c1_20, %c0_21, %c0_22], %40 {strides = array<i32>} : memref<2x8x128xf32, #tpu.memory_space<vmem>>, vector<1x8x128xf32>,
    } else {
    }
    return
  }
  func.func @transform_0(%arg0: i32, %arg1: i32, %arg2: memref<2xi32, #tpu.memory_space<smem>>) -> (i32, i32) {
    %c1_i32 = arith.constant 1 : i32
    %0 = arith.muli %arg0, %c1_i32 : i32
    %1 = arith.addi %0, %arg1 : i32
    %c1 = arith.constant 1 : index
    %2 = memref.load %arg2[%c1] : memref<2xi32, #tpu.memory_space<smem>>
    %3 = arith.minsi %1, %2 : i32
    %c0_i32 = arith.constant 0 : i32
    %c0_i32_0 = arith.constant 0 : i32
    return %3, %c0_i32 : i32, i32
  }
  func.func @transform_1(%arg0: i32, %arg1: i32, %arg2: memref<2xi32, #tpu.memory_space<smem>>) -> (i32, i32) {
    %c1_i32 = arith.constant 1 : i32
    %0 = arith.muli %arg0, %c1_i32 : i32
    %1 = arith.addi %0, %arg1 : i32
    %c1 = arith.constant 1 : index
    %2 = memref.load %arg2[%c1] : memref<2xi32, #tpu.memory_space<smem>>
    %3 = arith.minsi %1, %2 : i32
    %c0_i32 = arith.constant 0 : i32
    %c0_i32_0 = arith.constant 0 : i32
    return %3, %c0_i32 : i32, i32
  }
  func.func @transform_2(%arg0: i32, %arg1: i32, %arg2: memref<2xi32, #tpu.memory_space<smem>>) -> (i32, i32, i32) {
    %c0_i32 = arith.constant 0 : i32
    %c0_i32_0 = arith.constant 0 : i32
    %c0_i32_1 = arith.constant 0 : i32
    return %arg0, %c0_i32, %c0_i32_0 : i32, i32, i32
  }
}

</mosaic_0001>

<llo_original>
// kernel: tpu_custom_call.1
$region0: #{tpu_custom_call.1}
  #allocation0 [shape = 'u32[]', space=smem, size = 0x4, offset = 0x4, fixed_abs, tag = 'smem constant byte address 0x4 - core index']
  #allocation1 [shape = 'u32[144,128]{1,0:T(1,128)}', space=vmem, size = 0x12000, scoped, tag = 'internal scratch']
  #allocation2 [shape = 's32[1]{0}', space=sflag, size = 0x4, scoped, tag = 'scoped memory for tpu_custom_call.1']
  #allocation3 [shape = 'u8[512]{0}', space=smem, size = 0x200, scoped, tag = 'prefetched SMEM operand 0']
  %s0 = inlined_call_operand.hbm [shape: s32[2], index: 0, kind: input, shape index: {}]
  %s1 = inlined_call_operand.hbm [shape: f32[16,128], index: 1, kind: input, shape index: {}]
  %s2 = inlined_call_operand.hbm [shape: f32[16,128], index: 2, kind: input, shape index: {}]
  %s3 = inlined_call_operand.hbm [shape: f32[2,8,128], index: 3, kind: output, shape index: {}]
  %s4 = sld [smem:[#allocation0]]
  $region38: #{tpu_custom_call.1} parent=0
    _
  %s6 = ssub.s32 1, %s4
  %s7 = scalar_select 0, %s6, %s4
  %9 = dma.hbm_to_smem %s0, 16, [#allocation3], [#allocation2]
  %10 = dma.done [#allocation2], 16
  %11 = sfence
  $region1: #{tpu_custom_call.1} parent=0
    #allocation4 [shape = 'u8[8192]{0}', space=vmem, size = 0x2000, scoped, tag = 'input window, operand 1, single buffered']
    #allocation5 [shape = 's32[1]{0}', space=sflag, size = 0x4, scoped, tag = 'scoped memory for tpu_custom_call.1']
    #allocation6 [shape = 's32[1]{0}', space=sflag, size = 0x4, scoped, tag = 'scoped memory for tpu_custom_call.1']
    #allocation7 [shape = 'u8[8192]{0}', space=vmem, size = 0x2000, scoped, tag = 'input window, operand 2, single buffered']
    #allocation8 [shape = 's32[1]{0}', space=sflag, size = 0x4, scoped, tag = 'scoped memory for tpu_custom_call.1']
    #allocation9 [shape = 'u8[8192]{0}', space=vmem, size = 0x2000, scoped, tag = 'output window, operand 0, single buffered']
    %12 = vsyncpa [#allocation5], 0
    %13 = vsyncpa [#allocation8], 0
    %14 = vsyncpa [#allocation6], 0
    // Predicated region
    $region2: #{tpu_custom_call.1} parent=1 // pred_check
      _
    $region3: #{tpu_custom_call.1} parent=1 // pred_check_branch
      %16 = sbr.rel (0) target = $region5
    $region4: #{tpu_custom_call.1} parent=1 // pred_region
      %s17 = sadd.s32 0, 0
      %s18 = sld [smem:[#allocation3 + $0x1]]
      %p19 = scmp.lt.s32.totalorder %s17, %s18
      %s20 = scalar_select %p19, %s17, %s18
      %s21 = smul.u32 2, %s20
      %s23 = ssub.s32 256, 256
      %24 = vsyncadd [#allocation5], %s23
      %s25 = smul.addr %s21, 128
      %s26 = scalar_lea.hbm %s1, %s25
      %s27 = sshll.u32 [#allocation4], 4
      %s28 = int_to_ptr.vmem [resolvable:$true] %s27
      %33 = dma.hbm_to_vmem [thread:$0]  %s26, 256, %s28, [#allocation5], 128, 128, 8
    $region5: #{tpu_custom_call.1} parent=1 // pred_fallthru
      _
    // Predicated region
    $region6: #{tpu_custom_call.1} parent=1 // pred_check
      _
    $region7: #{tpu_custom_call.1} parent=1 // pred_check_branch
      %35 = sbr.rel (0) target = $region9
    $region8: #{tpu_custom_call.1} parent=1 // pred_region
      %s36 = sadd.s32 0, 0
      %s37 = sld [smem:[#allocation3 + $0x1]]
      %p38 = scmp.lt.s32.totalorder %s36, %s37
      %s39 = scalar_select %p38, %s36, %s37
      %s40 = smul.u32 2, %s39
      %s42 = ssub.s32 256, 256
      %43 = vsyncadd [#allocation8], %s42
      %s44 = smul.addr %s40, 128
      %s45 = scalar_lea.hbm %s2, %s44
      %s46 = sshll.u32 [#allocation7], 4
      %s47 = int_to_ptr.vmem [resolvable:$true] %s46
      %52 = dma.hbm_to_vmem [thread:$0]  %s45, 256, %s47, [#allocation8], 128, 128, 8
    $region9: #{tpu_custom_call.1} parent=1 // pred_fallthru
      _
    // Predicated region
    $region10: #{tpu_custom_call.1} parent=1 // pred_check
      _
    $region11: #{tpu_custom_call.1} parent=1 // pred_check_branch
      %54 = sbr.rel (0) target = $region13
    $region12: #{tpu_custom_call.1} parent=1 // pred_region
      %55 = dma.done [#allocation5], 256
    $region13: #{tpu_custom_call.1} parent=1 // pred_fallthru
      _
    // Predicated region
    $region14: #{tpu_custom_call.1} parent=1 // pred_check
      _
    $region15: #{tpu_custom_call.1} parent=1 // pred_check_branch
      %57 = sbr.rel (0) target = $region17
    $region16: #{tpu_custom_call.1} parent=1 // pred_region
      %58 = dma.done [#allocation8], 256
    $region17: #{tpu_custom_call.1} parent=1 // pred_fallthru
      _
    %s59 = sadd.s32 0, 0
    %s60 = sld [smem:[#allocation3 + $0x1]]
    %p61 = scmp.lt.s32.totalorder %s59, %s60
    %s62 = scalar_select %p61, %s59, %s60
    %s63 = smul.u32 2, %s62
    %s64 = sadd.s32 0, 0
    %s65 = sld [smem:[#allocation3 + $0x1]]
    %p66 = scmp.lt.s32.totalorder %s64, %s65
    %s67 = scalar_select %p66, %s64, %s65
    %s68 = smul.u32 2, %s67
    %p69 = scmp.eq.s32.totalorder 0, 0
    // Predicated region
    $region18: #{tpu_custom_call.1} parent=1 // pred_check
      %p70 = pneg %p69
    $region19: #{tpu_custom_call.1} parent=1 // pred_check_branch
      %72 = sbr.rel (%p70) target = $region21
    $region20: #{tpu_custom_call.1} parent=1 // pred_region
      %73 = vst [vmem:[#allocation9] sm:$0xff] 0.0
      %74 = vst [vmem:[#allocation9 + $0x8] sm:$0xff] 0.0
    $region21: #{tpu_custom_call.1} parent=1 // pred_fallthru
      _
    %s75 = sadd.s32 0, 0
    %s76 = sld [smem:[#allocation3]]
    %s77 = smul.u32 %s75, 16
    %s78 = ssub.s32 %s76, %s77
    %v79 = vld [vmem:[#allocation4] sm:$0xff]
    %v80 = vld [vmem:[#allocation4 + $0x8] sm:$0xff]
    %v81 = vld [vmem:[#allocation7] sm:$0xff]
    %v82 = vld [vmem:[#allocation7 + $0x8] sm:$0xff]
    %p83 = scmp.ge.s32.totalorder %s78, 16
    // Predicated region
    $region22: #{tpu_custom_call.1} parent=1 // pred_check
      %p84 = pneg %p83
    $region23: #{tpu_custom_call.1} parent=1 // pred_check_branch
      %86 = sbr.rel (%p84) target = $region25
    $region24: #{tpu_custom_call.1} parent=1 // pred_region
      %v87 = vmul.f32 %v79, %v81
      %v88 = vmul.f32 %v80, %v82
      %v89 = vadd.f32 %v87, %v88
      %v90 = vadd.f32 %v79, %v81
      %v91 = vadd.f32 %v80, %v82
      %v92 = vadd.f32 %v90, %v91
      %v93 = vld [vmem:[#allocation9] sm:$0xff]
      %v94 = vadd.f32 %v93, %v89
      %95 = vst [vmem:[#allocation9] sm:$0xff] %v94
      %s96 = scalar_lea.vmem [#allocation9], 8
      %v97 = vld [vmem:[%s96] sm:$0xff]
      %v98 = vadd.f32 %v97, %v92
      %99 = vst [vmem:[%s96] sm:$0xff] %v98
    $region25: #{tpu_custom_call.1} parent=1 // pred_fallthru
      _
    %p100 = scmp.lt.s32.totalorder %s78, 16
    // Predicated region
    $region26: #{tpu_custom_call.1} parent=1 // pred_check
      %p101 = pneg %p100
    $region27: #{tpu_custom_call.1} parent=1 // pred_check_branch
      %103 = sbr.rel (%p101) target = $region29
    $region28: #{tpu_custom_call.1} parent=1 // pred_region
      %v104 = vlaneseq
      %v105 = vshrl.u32 %v104, 7
      %v106 = vadd.s32 %v105, 8
      %v107 = vstv %s78
      %vm108 = vcmp.lt.s32.totalorder %v105, %v107
      %vm109 = vcmp.lt.s32.totalorder %v106, %v107
      %v110 = vsel %vm108, %v79, 0.0
      %v111 = vsel %vm109, %v80, 0.0
      %v112 = vsel %vm108, %v81, 0.0
      %v113 = vsel %vm109, %v82, 0.0
      %v114 = vmul.f32 %v110, %v112
      %v115 = vmul.f32 %v111, %v113
      %v116 = vadd.f32 %v114, %v115
      %v117 = vadd.f32 %v110, %v112
      %v118 = vadd.f32 %v111, %v113
      %v119 = vadd.f32 %v117, %v118
      %v120 = vld [vmem:[#allocation9] sm:$0xff]
      %v121 = vadd.f32 %v120, %v116
      %122 = vst [vmem:[#allocation9] sm:$0xff] %v121
      %s123 = scalar_lea.vmem [#allocation9], 8
      %v124 = vld [vmem:[%s123] sm:$0xff]
      %v125 = vadd.f32 %v124, %v119
      %126 = vst [vmem:[%s123] sm:$0xff] %v125
    $region29: #{tpu_custom_call.1} parent=1 // pred_fallthru
      _
    // Predicated region
    $region30: #{tpu_custom_call.1} parent=1 // pred_check
      _
    $region31: #{tpu_custom_call.1} parent=1 // pred_check_branch
      %128 = sbr.rel (0) target = $region33
    $region32: #{tpu_custom_call.1} parent=1 // pred_region
      %s130 = ssub.s32 256, 256
      %131 = vsyncadd [#allocation6], %s130
      %s132 = sshll.u32 [#allocation9], 4
      %s133 = int_to_ptr.vmem [resolvable:$true] %s132
      %138 = dma.vmem_to_hbm [thread:$0]  %s133, 256, %s3, [#allocation6], 128, 128, 8
    $region33: #{tpu_custom_call.1} parent=1 // pred_fallthru
      _
    // Predicated region
    $region34: #{tpu_custom_call.1} parent=1 // pred_check
      _
    $region35: #{tpu_custom_call.1} parent=1 // pred_check_branch
      %140 = sbr.rel (0) target = $region37
    $region36: #{tpu_custom_call.1} parent=1 // pred_region
      %141 = dma.done [#allocation6], 256
    $region37: #{tpu_custom_call.1} parent=1 // pred_fallthru
      _
    %142 = vsyncpa [#allocation5], 1
    %143 = vsyncpa [#allocation8], 1
    %144 = vsyncpa [#allocation6], 1

</llo_original>
